<compile_context>
chip_gen: v5e
topology: v5e:2x2
jax: 0.10.0
libtpu: 0.0.40
codegen_flags: <defaults>
</compile_context>

<pallas_src>
import functools

import jax
import jax.numpy as jnp
from jax.experimental import pallas as pl
from jax.experimental.pallas import tpu as pltpu


_VMEM_LIMIT = 32 * 1024 * 1024      # explicit scoped-VMEM limit (>= v5e default,
                                    # well under v7x's 64 MiB physical VMEM)
_BLOCK_BUDGET = 2 * 1024 * 1024     # target bytes for one (rows, hw) x tile


def _choose_tiles(rows, hw, itemsize, budget=_BLOCK_BUDGET):
    """Pick (row_tile, hw_tile) so one x block stays ~<= budget bytes."""
    # Lane (spatial) tile: full extent when small, else a multiple of 128.
    t = hw if hw <= 2048 else 2048
    # Sublane (row) tile: pack as many (batch, channel) rows as the budget
    # allows to amortize the ~0.35 us per-grid-step overhead.
    max_rows = max(8, budget // (t * itemsize))
    s = rows if rows <= max_rows else (max_rows // 8) * 8
    return s, t


def _pool_kernel(x_ref, sum_ref, *, hw_total, hw_tile):
    """Accumulate per-row spatial sums (f32) across the hw grid axis."""
    h = pl.program_id(1)

    @pl.when(h == 0)
    def _init():
        sum_ref[...] = jnp.zeros_like(sum_ref)

    x = x_ref[...]                                       # native dtype, no upcast
    if hw_total % hw_tile != 0:                          # static: ragged last tile
        lane = jax.lax.broadcasted_iota(jnp.int32, x.shape, 1)
        x = jnp.where(h * hw_tile + lane < hw_total, x, jnp.zeros_like(x))

    # Row-sum on the MXU (keeps VPU/XLU free in this DMA-bound stream);
    # f32 accumulation regardless of x's dtype.
    ones_col = jnp.ones((x.shape[1], 1), dtype=x.dtype)
    sum_ref[...] += jnp.dot(x, ones_col,
                            preferred_element_type=jnp.float32,
                            precision=jax.lax.Precision.HIGHEST)


def _gate_kernel(p_ref, w1_ref, w2_ref, g_ref):
    """gate = sigmoid(leaky_relu(pooled @ W1) @ W2); everything here is tiny."""
    pooled = p_ref[...]                                  # (B, C) f32, already * 1/HW
    h = jnp.dot(pooled, w1_ref[...],
                preferred_element_type=jnp.float32,
                precision=jax.lax.Precision.HIGHEST)
    h = jnp.where(h > 0, h, 0.01 * h)                    # LeakyReLU(0.01)
    z = jnp.dot(h, w2_ref[...],
                preferred_element_type=jnp.float32,
                precision=jax.lax.Precision.HIGHEST)
    g_ref[...] = 1.0 / (1.0 + jnp.exp(-z))               # Sigmoid


def _rescale_kernel(x_ref, g_ref, o_ref):
    """out = x * gate, streamed in x's native dtype; gate is a (rows, 1) column."""
    o_ref[...] = x_ref[...] * g_ref[...].astype(x_ref.dtype)


def cse_block(x, w1, w2):
    """x: (B, C, H, W).  w1: (C, C//r) = fc1.weight.T.  w2: (C//r, C) = fc2.weight.T."""
    B, C, H, W = x.shape
    HW = H * W
    rows = B * C
    Cr = w1.shape[1]
    itemsize = jnp.dtype(x.dtype).itemsize

    x2 = x.reshape(rows, HW)
    s, t = _choose_tiles(rows, HW, itemsize)
    grid_r = pl.cdiv(rows, s)
    grid_h = pl.cdiv(HW, t)

    # ---- Pass 1: global average pool (as accumulated sums; 1/HW folded below).
    pooled = pl.pallas_call(
        functools.partial(_pool_kernel, hw_total=HW, hw_tile=t),
        out_shape=jax.ShapeDtypeStruct((rows, 1), jnp.float32),
        grid_spec=pltpu.PrefetchScalarGridSpec(
            num_scalar_prefetch=0,
            grid=(grid_r, grid_h),
            in_specs=[pl.BlockSpec((s, t), lambda r, h: (r, h))],
            out_specs=pl.BlockSpec((s, 1), lambda r, h: (r, 0)),
        ),
        compiler_params=pltpu.CompilerParams(
            dimension_semantics=("parallel", "arbitrary"),
            vmem_limit_bytes=_VMEM_LIMIT),
    )(x2)

    # ---- Gate MLP on the tiny (B, C) pooled matrix (micro pallas_call).
    w1_scaled = w1.astype(jnp.float32) / HW              # fold avg-pool 1/HW into fc1
    w2_f32 = w2.astype(jnp.float32)
    gates = pl.pallas_call(
        _gate_kernel,
        out_shape=jax.ShapeDtypeStruct((B, C), jnp.float32),
        grid_spec=pltpu.PrefetchScalarGridSpec(
            num_scalar_prefetch=0,
            grid=(1,),
            in_specs=[pl.BlockSpec((B, C), lambda i: (0, 0)),
                      pl.BlockSpec((C, Cr), lambda i: (0, 0)),
                      pl.BlockSpec((Cr, C), lambda i: (0, 0))],
            out_specs=pl.BlockSpec((B, C), lambda i: (0, 0)),
        ),
        compiler_params=pltpu.CompilerParams(
            dimension_semantics=("arbitrary",),
            vmem_limit_bytes=_VMEM_LIMIT),
    )(pooled.reshape(B, C), w1_scaled, w2_f32)

    # ---- Pass 2: channel-wise rescale, tiled over rows and spatial lanes.
    out2 = pl.pallas_call(
        _rescale_kernel,
        out_shape=jax.ShapeDtypeStruct((rows, HW), x.dtype),
        grid_spec=pltpu.PrefetchScalarGridSpec(
            num_scalar_prefetch=0,
            grid=(grid_r, grid_h),
            in_specs=[pl.BlockSpec((s, t), lambda r, h: (r, h)),
                      pl.BlockSpec((s, 1), lambda r, h: (r, 0))],
            out_specs=pl.BlockSpec((s, t), lambda r, h: (r, h)),
        ),
        compiler_params=pltpu.CompilerParams(
            dimension_semantics=("parallel", "parallel"),
            vmem_limit_bytes=_VMEM_LIMIT),
        # NOTE: add input_output_aliases={0: 0} here if the activation may be
        # overwritten in place (halves HBM footprint inside a larger model).
    )(x2, gates.reshape(rows, 1))

    return out2.reshape(B, C, H, W)


def cse_block_ref(x, w1, w2):
    """Pure-JAX reference for correctness checking."""
    pooled = jnp.mean(x.astype(jnp.float32), axis=(2, 3))          # (B, C)
    h = jnp.dot(pooled, w1, precision=jax.lax.Precision.HIGHEST)
    h = jnp.where(h > 0, h, 0.01 * h)
    gate = jax.nn.sigmoid(jnp.dot(h, w2, precision=jax.lax.Precision.HIGHEST))
    return x * gate[:, :, None, None].astype(x.dtype)


if __name__ == "__main__":
    # Small shapes consistent with the module: reduction=16 requires C >= 16.
    B, C, H, W = 2, 32, 16, 16
    reduction = 16
    Cr = C // reduction                                            # = 2

    key = jax.random.PRNGKey(0)
    kx, k1, k2 = jax.random.split(key, 3)
    x = jax.random.normal(kx, (B, C, H, W), dtype=jnp.float32)
    # Deterministic synthetic weights (torch shapes: fc1 (Cr, C), fc2 (C, Cr));
    # stored transposed so kernels compute y = x @ W.
    w1 = jax.random.normal(k1, (C, Cr), dtype=jnp.float32) * 0.1
    w2 = jax.random.normal(k2, (Cr, C), dtype=jnp.float32) * 0.1

    out = jax.block_until_ready(cse_block(x, w1, w2))
    ref = jax.block_until_ready(cse_block_ref(x, w1, w2))

    assert out.shape == (B, C, H, W)
    assert jnp.allclose(out, ref, atol=2e-5, rtol=2e-5), float(jnp.max(jnp.abs(out - ref)))
    print("KERNEL_OK")
</pallas_src>

<mosaic_0001>
module attributes {stable_mosaic.version = 11 : i64} {
  func.func @_pool_kernel(%arg0: i32, %arg1: i32, %arg2: memref<64x256xf32, #tpu.memory_space<vmem>>, %arg3: memref<64x1xf32, #tpu.memory_space<vmem>>) attributes {dimension_semantics = [#tpu.dimension_semantics<parallel>, #tpu.dimension_semantics<arbitrary>], iteration_bounds = array<i64: 1, 1>, scalar_prefetch = 0 : i64, scratch_operands = 0 : i64, tpu.core_type = #tpu.core_type<tc>, window_params = [{transform_indices = @transform_0, window_bounds = array<i64: 64, 256>}, {transform_indices = @transform_1, window_bounds = array<i64: 64, 1>}]} {
    %c0_i32 = arith.constant 0 : i32
    %0 = arith.cmpi eq, %arg1, %c0_i32 : i32
    %1 = arith.extui %0 : i1 to i32
    %c0_i32_0 = arith.constant 0 : i32
    %2 = arith.cmpi ne, %1, %c0_i32_0 : i32
    scf.if %2 {
      %cst_7 = arith.constant 0.000000e+00 : f32
      %9 = vector.broadcast %cst_7 : f32 to vector<64x1xf32>
      %c0_8 = arith.constant 0 : index
      %c0_9 = arith.constant 0 : index
      %10 = vector.load %arg3[%c0_8, %c0_9] : memref<64x1xf32, #tpu.memory_space<vmem>>, vector<64x1xf32>
      tpu.vector_store %arg3[%c0_8, %c0_9], %9 {strides = array<i32>} : memref<64x1xf32, #tpu.memory_space<vmem>>, vector<64x1xf32>,
    } else {
    }
    %c0 = arith.constant 0 : index
    %c0_1 = arith.constant 0 : index
    %3 = vector.load %arg2[%c0, %c0_1] : memref<64x256xf32, #tpu.memory_space<vmem>>, vector<64x256xf32>
    %cst = arith.constant 1.000000e+00 : f32
    %4 = vector.broadcast %cst : f32 to vector<256x1xf32>
    %c0_2 = arith.constant 0 : index
    %c0_3 = arith.constant 0 : index
    %5 = vector.load %arg3[%c0_2, %c0_3] : memref<64x1xf32, #tpu.memory_space<vmem>>, vector<64x1xf32>
    %cst_4 = arith.constant dense<0.000000e+00> : vector<64x1xf32>
    %6 = tpu.matmul %3, %4, %cst_4 {dimension_numbers = #tpu.dot_dimension_numbers<[1], [0], [0], [1], [0, 0, 1, 1], [], []>, precision = #tpu.contract_precision<fp32>} : vector<64x256xf32>, vector<256x1xf32>, vector<64x1xf32> -> vector<64x1xf32>
    %7 = arith.addf %5, %6 : vector<64x1xf32>
    %c0_5 = arith.constant 0 : index
    %c0_6 = arith.constant 0 : index
    %8 = vector.load %arg3[%c0_5, %c0_6] : memref<64x1xf32, #tpu.memory_space<vmem>>, vector<64x1xf32>
    tpu.vector_store %arg3[%c0_5, %c0_6], %7 {strides = array<i32>} : memref<64x1xf32, #tpu.memory_space<vmem>>, vector<64x1xf32>,
    return
  }
  func.func @transform_0(%arg0: i32, %arg1: i32) -> (i32, i32) {
    %c0_i32 = arith.constant 0 : i32
    return %arg0, %arg1 : i32, i32
  }
  func.func @transform_1(%arg0: i32, %arg1: i32) -> (i32, i32) {
    %c0_i32 = arith.constant 0 : i32
    %c0_i32_0 = arith.constant 0 : i32
    return %arg0, %c0_i32 : i32, i32
  }
}

</mosaic_0001>

<llo_original>
// kernel: tpu_custom_call.1
$region0: #{tpu_custom_call.1}
  #allocation0 [shape = 'u32[]', space=smem, size = 0x4, offset = 0x4, fixed_abs, tag = 'smem constant byte address 0x4 - core index']
  #allocation1 [shape = 'u32[72,128]{1,0:T(1,128)}', space=vmem, size = 0x9000, scoped, tag = 'internal scratch']
  %s0 = inlined_call_operand.hbm [shape: f32[64,256], index: 0, kind: input, shape index: {}]
  %s1 = inlined_call_operand.vmem [shape: f32[64,1], index: 1, kind: output, shape index: {}]
  %s2 = sld [smem:[#allocation0]]
  $region22: #{tpu_custom_call.1} parent=0
    _
  %s4 = ssub.s32 1, %s2
  %s5 = scalar_select 0, %s4, %s2
  $region1: #{tpu_custom_call.1} parent=0
    #allocation2 [shape = 'u8[65536]{0}', space=vmem, size = 0x10000, scoped, tag = 'input window, operand 0, single buffered']
    #allocation3 [shape = 's32[1]{0}', space=sflag, size = 0x4, scoped, tag = 'scoped memory for tpu_custom_call.1']
    %6 = vsyncpa [#allocation3], 0
    // Predicated region
    $region2: #{tpu_custom_call.1} parent=1 // pred_check
      _
    $region3: #{tpu_custom_call.1} parent=1 // pred_check_branch
      %8 = sbr.rel (0) target = $region5
    $region4: #{tpu_custom_call.1} parent=1 // pred_region
      %10 = vsyncadd [#allocation3], 0
      %s11 = sshll.u32 %s0, 4
      %s12 = int_to_ptr.hbm [resolvable:$true] %s11
      %s13 = sshll.u32 [#allocation2], 4
      %s14 = int_to_ptr.vmem [resolvable:$true] %s13
      %19 = dma.hbm_to_vmem [thread:$0]  %s12, 2048, %s14, [#allocation3], 256, 256, 16
    $region5: #{tpu_custom_call.1} parent=1 // pred_fallthru
      _
    // Predicated region
    $region6: #{tpu_custom_call.1} parent=1 // pred_check
      _
    $region7: #{tpu_custom_call.1} parent=1 // pred_check_branch
      %21 = sbr.rel (0) target = $region9
    $region8: #{tpu_custom_call.1} parent=1 // pred_region
      %23 = dma.done [#allocation3], 2048
    $region9: #{tpu_custom_call.1} parent=1 // pred_fallthru
      _
    %p24 = scmp.eq.s32.totalorder 0, 0
    // Predicated region
    $region10: #{tpu_custom_call.1} parent=1 // pred_check
      %p25 = pneg %p24
    $region11: #{tpu_custom_call.1} parent=1 // pred_check_branch
      %27 = sbr.rel (%p25) target = $region13
    $region12: #{tpu_custom_call.1} parent=1 // pred_region
      %vm28 = vcmask 7168
      %29 = vst.msk [vmem:[%s1] sm:$0xff] %vm28, 0.0
      %30 = vst.msk [vmem:[%s1 + $0x8] sm:$0xff] %vm28, 0.0
      %31 = vst.msk [vmem:[%s1 + $0x10] sm:$0xff] %vm28, 0.0
      %32 = vst.msk [vmem:[%s1 + $0x18] sm:$0xff] %vm28, 0.0
      %33 = vst.msk [vmem:[%s1 + $0x20] sm:$0xff] %vm28, 0.0
      %34 = vst.msk [vmem:[%s1 + $0x28] sm:$0xff] %vm28, 0.0
      %35 = vst.msk [vmem:[%s1 + $0x30] sm:$0xff] %vm28, 0.0
      %36 = vst.msk [vmem:[%s1 + $0x38] sm:$0xff] %vm28, 0.0
    $region13: #{tpu_custom_call.1} parent=1 // pred_fallthru
      _
    %v37 = vld [vmem:[#allocation2] sm:$0xff]
    %v38 = vld [vmem:[#allocation2 + $0x8] sm:$0xff]
    %v39 = vld [vmem:[#allocation2 + $0x10] sm:$0xff]
    %v40 = vld [vmem:[#allocation2 + $0x18] sm:$0xff]
    %v41 = vld [vmem:[#allocation2 + $0x20] sm:$0xff]
    %v42 = vld [vmem:[#allocation2 + $0x28] sm:$0xff]
    %v43 = vld [vmem:[#allocation2 + $0x30] sm:$0xff]
    %v44 = vld [vmem:[#allocation2 + $0x38] sm:$0xff]
    %v45 = vld [vmem:[#allocation2 + $0x40] sm:$0xff]
    %v46 = vld [vmem:[#allocation2 + $0x48] sm:$0xff]
    %v47 = vld [vmem:[#allocation2 + $0x50] sm:$0xff]
    %v48 = vld [vmem:[#allocation2 + $0x58] sm:$0xff]
    %v49 = vld [vmem:[#allocation2 + $0x60] sm:$0xff]
    %v50 = vld [vmem:[#allocation2 + $0x68] sm:$0xff]
    %v51 = vld [vmem:[#allocation2 + $0x70] sm:$0xff]
    %v52 = vld [vmem:[#allocation2 + $0x78] sm:$0xff]
    %v53 = vld [vmem:[%s1] sm:$0xff]
    %v54 = vld [vmem:[%s1 + $0x8] sm:$0xff]
    %v55 = vld [vmem:[%s1 + $0x10] sm:$0xff]
    %v56 = vld [vmem:[%s1 + $0x18] sm:$0xff]
    %v57 = vld [vmem:[%s1 + $0x20] sm:$0xff]
    %v58 = vld [vmem:[%s1 + $0x28] sm:$0xff]
    %v59 = vld [vmem:[%s1 + $0x30] sm:$0xff]
    %v60 = vld [vmem:[%s1 + $0x38] sm:$0xff]
    %61 = vmatpush.msra.mxu0 1.0
    %62 = vmatpush.msra.mxu0 1.0
    %63 = vmatpush.msra.mxu0 1.0
    %64 = vmatpush.msra.mxu0 1.0
    %65 = vmatpush.msra.mxu0 1.0
    %66 = vmatpush.msra.mxu0 1.0
    %67 = vmatpush.msra.mxu0 1.0
    %68 = vmatpush.msra.mxu0 1.0
    %69 = vmatpush.msra.mxu0 1.0
    %70 = vmatpush.msra.mxu0 1.0
    %71 = vmatpush.msra.mxu0 1.0
    %72 = vmatpush.msra.mxu0 1.0
    %73 = vmatpush.msra.mxu0 1.0
    %74 = vmatpush.msra.mxu0 1.0
    %75 = vmatpush.msra.mxu0 1.0
    %76 = vmatpush.msra.mxu0 1.0
    %v77 = vand.u32 %v37, 4294901760
    %v78 = vsub.f32 %v37, %v77
    %v79 = vand.u32 %v78, 4294901760
    %v80 = vsub.f32 %v78, %v79
    %v81 = vand.u32 %v80, 4294901760
    %82 = vmatmul.f32.gmra.mxu0 %v81
    %v83 = vpop.f32.mrf.mxu0
    %v84 = vadd.f32 0.0, %v83
    %v85 = vand.u32 %v39, 4294901760
    %v86 = vsub.f32 %v39, %v85
    %v87 = vand.u32 %v86, 4294901760
    %v88 = vsub.f32 %v86, %v87
    %v89 = vand.u32 %v88, 4294901760
    %90 = vmatmul.f32.gmra.mxu0 %v89
    %v91 = vpop.f32.mrf.mxu0
    %v92 = vadd.f32 0.0, %v91
    %v93 = vand.u32 %v41, 4294901760
    %v94 = vsub.f32 %v41, %v93
    %v95 = vand.u32 %v94, 4294901760
    %v96 = vsub.f32 %v94, %v95
    %v97 = vand.u32 %v96, 4294901760
    %98 = vmatmul.f32.gmra.mxu0 %v97
    %v99 = vpop.f32.mrf.mxu0
    %v100 = vadd.f32 0.0, %v99
    %v101 = vand.u32 %v43, 4294901760
    %v102 = vsub.f32 %v43, %v101
    %v103 = vand.u32 %v102, 4294901760
    %v104 = vsub.f32 %v102, %v103
    %v105 = vand.u32 %v104, 4294901760
    %106 = vmatmul.f32.gmra.mxu0 %v105
    %v107 = vpop.f32.mrf.mxu0
    %v108 = vadd.f32 0.0, %v107
    %v109 = vand.u32 %v45, 4294901760
    %v110 = vsub.f32 %v45, %v109
    %v111 = vand.u32 %v110, 4294901760
    %v112 = vsub.f32 %v110, %v111
    %v113 = vand.u32 %v112, 4294901760
    %114 = vmatmul.f32.gmra.mxu0 %v113
    %v115 = vpop.f32.mrf.mxu0
    %v116 = vadd.f32 0.0, %v115
    %v117 = vand.u32 %v47, 4294901760
    %v118 = vsub.f32 %v47, %v117
    %v119 = vand.u32 %v118, 4294901760
    %v120 = vsub.f32 %v118, %v119
    %v121 = vand.u32 %v120, 4294901760
    %122 = vmatmul.f32.gmra.mxu0 %v121
    %v123 = vpop.f32.mrf.mxu0
    %v124 = vadd.f32 0.0, %v123
    %v125 = vand.u32 %v49, 4294901760
    %v126 = vsub.f32 %v49, %v125
    %v127 = vand.u32 %v126, 4294901760
    %v128 = vsub.f32 %v126, %v127
    %v129 = vand.u32 %v128, 4294901760
    %130 = vmatmul.f32.gmra.mxu0 %v129
    %v131 = vpop.f32.mrf.mxu0
    %v132 = vadd.f32 0.0, %v131
    %v133 = vand.u32 %v51, 4294901760
    %v134 = vsub.f32 %v51, %v133
    %v135 = vand.u32 %v134, 4294901760
    %v136 = vsub.f32 %v134, %v135
    %v137 = vand.u32 %v136, 4294901760
    %138 = vmatmul.f32.gmra.mxu0 %v137
    %v139 = vpop.f32.mrf.mxu0
    %v140 = vadd.f32 0.0, %v139
    %141 = vdwg.mxu0
    %142 = vmatpush.msra.mxu0 0.0
    %143 = vmatpush.msra.mxu0 0.0
    %144 = vmatpush.msra.mxu0 0.0
    %145 = vmatpush.msra.mxu0 0.0
    %146 = vmatpush.msra.mxu0 0.0
    %147 = vmatpush.msra.mxu0 0.0
    %148 = vmatpush.msra.mxu0 0.0
    %149 = vmatpush.msra.mxu0 0.0
    %150 = vmatpush.msra.mxu0 0.0
    %151 = vmatpush.msra.mxu0 0.0
    %152 = vmatpush.msra.mxu0 0.0
    %153 = vmatpush.msra.mxu0 0.0
    %154 = vmatpush.msra.mxu0 0.0
    %155 = vmatpush.msra.mxu0 0.0
    %156 = vmatpush.msra.mxu0 0.0
    %157 = vmatpush.msra.mxu0 0.0
    %v158 = vand.u32 %v37, 4294901760
    %159 = vmatmul.f32.gmra.mxu0 %v158
    %v160 = vpop.f32.mrf.mxu0
    %v161 = vadd.f32 %v84, %v160
    %v162 = vand.u32 %v39, 4294901760
    %163 = vmatmul.f32.gmra.mxu0 %v162
    %v164 = vpop.f32.mrf.mxu0
    %v165 = vadd.f32 %v92, %v164
    %v166 = vand.u32 %v41, 4294901760
    %167 = vmatmul.f32.gmra.mxu0 %v166
    %v168 = vpop.f32.mrf.mxu0
    %v169 = vadd.f32 %v100, %v168
    %v170 = vand.u32 %v43, 4294901760
    %171 = vmatmul.f32.gmra.mxu0 %v170
    %v172 = vpop.f32.mrf.mxu0
    %v173 = vadd.f32 %v108, %v172
    %v174 = vand.u32 %v45, 4294901760
    %175 = vmatmul.f32.gmra.mxu0 %v174
    %v176 = vpop.f32.mrf.mxu0
    %v177 = vadd.f32 %v116, %v176
    %v178 = vand.u32 %v47, 4294901760
    %179 = vmatmul.f32.gmra.mxu0 %v178
    %v180 = vpop.f32.mrf.mxu0
    %v181 = vadd.f32 %v124, %v180
    %v182 = vand.u32 %v49, 4294901760
    %183 = vmatmul.f32.gmra.mxu0 %v182
    %v184 = vpop.f32.mrf.mxu0
    %v185 = vadd.f32 %v132, %v184
    %v186 = vand.u32 %v51, 4294901760
    %187 = vmatmul.f32.gmra.mxu0 %v186
    %v188 = vpop.f32.mrf.mxu0
    %v189 = vadd.f32 %v140, %v188
    %190 = vdwg.mxu0
    %191 = vmatpush.msra.mxu0 0.0
    %192 = vmatpush.msra.mxu0 0.0
    %193 = vmatpush.msra.mxu0 0.0
    %194 = vmatpush.msra.mxu0 0.0
    %195 = vmatpush.msra.mxu0 0.0
    %196 = vmatpush.msra.mxu0 0.0
    %197 = vmatpush.msra.mxu0 0.0
    %198 = vmatpush.msra.mxu0 0.0
    %199 = vmatpush.msra.mxu0 0.0
    %200 = vmatpush.msra.mxu0 0.0
    %201 = vmatpush.msra.mxu0 0.0
    %202 = vmatpush.msra.mxu0 0.0
    %203 = vmatpush.msra.mxu0 0.0
    %204 = vmatpush.msra.mxu0 0.0
    %205 = vmatpush.msra.mxu0 0.0
    %206 = vmatpush.msra.mxu0 0.0
    %v207 = vand.u32 %v37, 4294901760
    %v208 = vsub.f32 %v37, %v207
    %209 = vmatmul.f32.gmra.mxu0 %v208
    %v210 = vpop.f32.mrf.mxu0
    %v211 = vadd.f32 %v161, %v210
    %v212 = vand.u32 %v39, 4294901760
    %v213 = vsub.f32 %v39, %v212
    %214 = vmatmul.f32.gmra.mxu0 %v213
    %v215 = vpop.f32.mrf.mxu0
    %v216 = vadd.f32 %v165, %v215
    %v217 = vand.u32 %v41, 4294901760
    %v218 = vsub.f32 %v41, %v217
    %219 = vmatmul.f32.gmra.mxu0 %v218
    %v220 = vpop.f32.mrf.mxu0
    %v221 = vadd.f32 %v169, %v220
    %v222 = vand.u32 %v43, 4294901760
    %v223 = vsub.f32 %v43, %v222
    %224 = vmatmul.f32.gmra.mxu0 %v223
    %v225 = vpop.f32.mrf.mxu0
    %v226 = vadd.f32 %v173, %v225
    %v227 = vand.u32 %v45, 4294901760
    %v228 = vsub.f32 %v45, %v227
    %229 = vmatmul.f32.gmra.mxu0 %v228
    %v230 = vpop.f32.mrf.mxu0
    %v231 = vadd.f32 %v177, %v230
    %v232 = vand.u32 %v47, 4294901760
    %v233 = vsub.f32 %v47, %v232
    %234 = vmatmul.f32.gmra.mxu0 %v233
    %v235 = vpop.f32.mrf.mxu0
    %v236 = vadd.f32 %v181, %v235
    %v237 = vand.u32 %v49, 4294901760
    %v238 = vsub.f32 %v49, %v237
    %239 = vmatmul.f32.gmra.mxu0 %v238
    %v240 = vpop.f32.mrf.mxu0
    %v241 = vadd.f32 %v185, %v240
    %v242 = vand.u32 %v51, 4294901760
    %v243 = vsub.f32 %v51, %v242
    %244 = vmatmul.f32.gmra.mxu0 %v243
    %v245 = vpop.f32.mrf.mxu0
    %v246 = vadd.f32 %v189, %v245
    %247 = vdwg.mxu0
    %248 = vmatpush.msra.mxu0 1.0
    %249 = vmatpush.msra.mxu0 1.0
    %250 = vmatpush.msra.mxu0 1.0
    %251 = vmatpush.msra.mxu0 1.0
    %252 = vmatpush.msra.mxu0 1.0
    %253 = vmatpush.msra.mxu0 1.0
    %254 = vmatpush.msra.mxu0 1.0
    %255 = vmatpush.msra.mxu0 1.0
    %256 = vmatpush.msra.mxu0 1.0
    %257 = vmatpush.msra.mxu0 1.0
    %258 = vmatpush.msra.mxu0 1.0
    %259 = vmatpush.msra.mxu0 1.0
    %260 = vmatpush.msra.mxu0 1.0
    %261 = vmatpush.msra.mxu0 1.0
    %262 = vmatpush.msra.mxu0 1.0
    %263 = vmatpush.msra.mxu0 1.0
    %v264 = vand.u32 %v37, 4294901760
    %v265 = vsub.f32 %v37, %v264
    %v266 = vand.u32 %v265, 4294901760
    %267 = vmatmul.f32.gmra.mxu0 %v266
    %v268 = vpop.f32.mrf.mxu0
    %v269 = vadd.f32 %v211, %v268
    %v270 = vand.u32 %v39, 4294901760
    %v271 = vsub.f32 %v39, %v270
    %v272 = vand.u32 %v271, 4294901760
    %273 = vmatmul.f32.gmra.mxu0 %v272
    %v274 = vpop.f32.mrf.mxu0
    %v275 = vadd.f32 %v216, %v274
    %v276 = vand.u32 %v41, 4294901760
    %v277 = vsub.f32 %v41, %v276
    %v278 = vand.u32 %v277, 4294901760
    %279 = vmatmul.f32.gmra.mxu0 %v278
    %v280 = vpop.f32.mrf.mxu0
    %v281 = vadd.f32 %v221, %v280
    %v282 = vand.u32 %v43, 4294901760
    %v283 = vsub.f32 %v43, %v282
    %v284 = vand.u32 %v283, 4294901760
    %285 = vmatmul.f32.gmra.mxu0 %v284
    %v286 = vpop.f32.mrf.mxu0
    %v287 = vadd.f32 %v226, %v286
    %v288 = vand.u32 %v45, 4294901760
    %v289 = vsub.f32 %v45, %v288
    %v290 = vand.u32 %v289, 4294901760
    %291 = vmatmul.f32.gmra.mxu0 %v290
    %v292 = vpop.f32.mrf.mxu0
    %v293 = vadd.f32 %v231, %v292
    %v294 = vand.u32 %v47, 4294901760
    %v295 = vsub.f32 %v47, %v294
    %v296 = vand.u32 %v295, 4294901760
    %297 = vmatmul.f32.gmra.mxu0 %v296
    %v298 = vpop.f32.mrf.mxu0
    %v299 = vadd.f32 %v236, %v298
    %v300 = vand.u32 %v49, 4294901760
    %v301 = vsub.f32 %v49, %v300
    %v302 = vand.u32 %v301, 4294901760
    %303 = vmatmul.f32.gmra.mxu0 %v302
    %v304 = vpop.f32.mrf.mxu0
    %v305 = vadd.f32 %v241, %v304
    %v306 = vand.u32 %v51, 4294901760
    %v307 = vsub.f32 %v51, %v306
    %v308 = vand.u32 %v307, 4294901760
    %309 = vmatmul.f32.gmra.mxu0 %v308
    %v310 = vpop.f32.mrf.mxu0
    %v311 = vadd.f32 %v246, %v310
    %312 = vdwg.mxu0
    %313 = vmatpush.msra.mxu0 0.0
    %314 = vmatpush.msra.mxu0 0.0
    %315 = vmatpush.msra.mxu0 0.0
    %316 = vmatpush.msra.mxu0 0.0
    %317 = vmatpush.msra.mxu0 0.0
    %318 = vmatpush.msra.mxu0 0.0
    %319 = vmatpush.msra.mxu0 0.0
    %320 = vmatpush.msra.mxu0 0.0
    %321 = vmatpush.msra.mxu0 0.0
    %322 = vmatpush.msra.mxu0 0.0
    %323 = vmatpush.msra.mxu0 0.0
    %324 = vmatpush.msra.mxu0 0.0
    %325 = vmatpush.msra.mxu0 0.0
    %326 = vmatpush.msra.mxu0 0.0
    %327 = vmatpush.msra.mxu0 0.0
    %328 = vmatpush.msra.mxu0 0.0
    %v329 = vand.u32 %v37, 4294901760
    %330 = vmatmul.f32.gmra.mxu0 %v329
    %v331 = vpop.f32.mrf.mxu0
    %v332 = vadd.f32 %v269, %v331
    %v333 = vand.u32 %v39, 4294901760
    %334 = vmatmul.f32.gmra.mxu0 %v333
    %v335 = vpop.f32.mrf.mxu0
    %v336 = vadd.f32 %v275, %v335
    %v337 = vand.u32 %v41, 4294901760
    %338 = vmatmul.f32.gmra.mxu0 %v337
    %v339 = vpop.f32.mrf.mxu0
    %v340 = vadd.f32 %v281, %v339
    %v341 = vand.u32 %v43, 4294901760
    %342 = vmatmul.f32.gmra.mxu0 %v341
    %v343 = vpop.f32.mrf.mxu0
    %v344 = vadd.f32 %v287, %v343
    %v345 = vand.u32 %v45, 4294901760
    %346 = vmatmul.f32.gmra.mxu0 %v345
    %v347 = vpop.f32.mrf.mxu0
    %v348 = vadd.f32 %v293, %v347
    %v349 = vand.u32 %v47, 4294901760
    %350 = vmatmul.f32.gmra.mxu0 %v349
    %v351 = vpop.f32.mrf.mxu0
    %v352 = vadd.f32 %v299, %v351
    %v353 = vand.u32 %v49, 4294901760
    %354 = vmatmul.f32.gmra.mxu0 %v353
    %v355 = vpop.f32.mrf.mxu0
    %v356 = vadd.f32 %v305, %v355
    %v357 = vand.u32 %v51, 4294901760
    %358 = vmatmul.f32.gmra.mxu0 %v357
    %v359 = vpop.f32.mrf.mxu0
    %v360 = vadd.f32 %v311, %v359
    %361 = vdwg.mxu0
    %362 = vmatpush.msra.mxu0 1.0
    %363 = vmatpush.msra.mxu0 1.0
    %364 = vmatpush.msra.mxu0 1.0
    %365 = vmatpush.msra.mxu0 1.0
    %366 = vmatpush.msra.mxu0 1.0
    %367 = vmatpush.msra.mxu0 1.0
    %368 = vmatpush.msra.mxu0 1.0
    %369 = vmatpush.msra.mxu0 1.0
    %370 = vmatpush.msra.mxu0 1.0
    %371 = vmatpush.msra.mxu0 1.0
    %372 = vmatpush.msra.mxu0 1.0
    %373 = vmatpush.msra.mxu0 1.0
    %374 = vmatpush.msra.mxu0 1.0
    %375 = vmatpush.msra.mxu0 1.0
    %376 = vmatpush.msra.mxu0 1.0
    %377 = vmatpush.msra.mxu0 1.0
    %v378 = vand.u32 %v37, 4294901760
    %379 = vmatmul.f32.gmra.mxu0 %v378
    %v380 = vpop.f32.mrf.mxu0
    %v381 = vadd.f32 %v332, %v380
    %v382 = vand.u32 %v39, 4294901760
    %383 = vmatmul.f32.gmra.mxu0 %v382
    %v384 = vpop.f32.mrf.mxu0
    %v385 = vadd.f32 %v336, %v384
    %v386 = vand.u32 %v41, 4294901760
    %387 = vmatmul.f32.gmra.mxu0 %v386
    %v388 = vpop.f32.mrf.mxu0
    %v389 = vadd.f32 %v340, %v388
    %v390 = vand.u32 %v43, 4294901760
    %391 = vmatmul.f32.gmra.mxu0 %v390
    %v392 = vpop.f32.mrf.mxu0
    %v393 = vadd.f32 %v344, %v392
    %v394 = vand.u32 %v45, 4294901760
    %395 = vmatmul.f32.gmra.mxu0 %v394
    %v396 = vpop.f32.mrf.mxu0
    %v397 = vadd.f32 %v348, %v396
    %v398 = vand.u32 %v47, 4294901760
    %399 = vmatmul.f32.gmra.mxu0 %v398
    %v400 = vpop.f32.mrf.mxu0
    %v401 = vadd.f32 %v352, %v400
    %v402 = vand.u32 %v49, 4294901760
    %403 = vmatmul.f32.gmra.mxu0 %v402
    %v404 = vpop.f32.mrf.mxu0
    %v405 = vadd.f32 %v356, %v404
    %v406 = vand.u32 %v51, 4294901760
    %407 = vmatmul.f32.gmra.mxu0 %v406
    %v408 = vpop.f32.mrf.mxu0
    %v409 = vadd.f32 %v360, %v408
    %410 = vdwg.mxu0
    %411 = vmatpush.msra.mxu0 1.0
    %412 = vmatpush.msra.mxu0 1.0
    %413 = vmatpush.msra.mxu0 1.0
    %414 = vmatpush.msra.mxu0 1.0
    %415 = vmatpush.msra.mxu0 1.0
    %416 = vmatpush.msra.mxu0 1.0
    %417 = vmatpush.msra.mxu0 1.0
    %418 = vmatpush.msra.mxu0 1.0
    %419 = vmatpush.msra.mxu0 1.0
    %420 = vmatpush.msra.mxu0 1.0
    %421 = vmatpush.msra.mxu0 1.0
    %422 = vmatpush.msra.mxu0 1.0
    %423 = vmatpush.msra.mxu0 1.0
    %424 = vmatpush.msra.mxu0 1.0
    %425 = vmatpush.msra.mxu0 1.0
    %426 = vmatpush.msra.mxu0 1.0
    %v427 = vand.u32 %v38, 4294901760
    %v428 = vsub.f32 %v38, %v427
    %v429 = vand.u32 %v428, 4294901760
    %v430 = vsub.f32 %v428, %v429
    %v431 = vand.u32 %v430, 4294901760
    %432 = vmatmul.f32.gmra.mxu0 %v431
    %v433 = vpop.f32.mrf.mxu0
    %v434 = vadd.f32 %v381, %v433
    %v435 = vand.u32 %v40, 4294901760
    %v436 = vsub.f32 %v40, %v435
    %v437 = vand.u32 %v436, 4294901760
    %v438 = vsub.f32 %v436, %v437
    %v439 = vand.u32 %v438, 4294901760
    %440 = vmatmul.f32.gmra.mxu0 %v439
    %v441 = vpop.f32.mrf.mxu0
    %v442 = vadd.f32 %v385, %v441
    %v443 = vand.u32 %v42, 4294901760
    %v444 = vsub.f32 %v42, %v443
    %v445 = vand.u32 %v444, 4294901760
    %v446 = vsub.f32 %v444, %v445
    %v447 = vand.u32 %v446, 4294901760
    %448 = vmatmul.f32.gmra.mxu0 %v447
    %v449 = vpop.f32.mrf.mxu0
    %v450 = vadd.f32 %v389, %v449
    %v451 = vand.u32 %v44, 4294901760
    %v452 = vsub.f32 %v44, %v451
    %v453 = vand.u32 %v452, 4294901760
    %v454 = vsub.f32 %v452, %v453
    %v455 = vand.u32 %v454, 4294901760
    %456 = vmatmul.f32.gmra.mxu0 %v455
    %v457 = vpop.f32.mrf.mxu0
    %v458 = vadd.f32 %v393, %v457
    %v459 = vand.u32 %v46, 4294901760
    %v460 = vsub.f32 %v46, %v459
    %v461 = vand.u32 %v460, 4294901760
    %v462 = vsub.f32 %v460, %v461
    %v463 = vand.u32 %v462, 4294901760
    %464 = vmatmul.f32.gmra.mxu0 %v463
    %v465 = vpop.f32.mrf.mxu0
    %v466 = vadd.f32 %v397, %v465
    %v467 = vand.u32 %v48, 4294901760
    %v468 = vsub.f32 %v48, %v467
    %v469 = vand.u32 %v468, 4294901760
    %v470 = vsub.f32 %v468, %v469
    %v471 = vand.u32 %v470, 4294901760
    %472 = vmatmul.f32.gmra.mxu0 %v471
    %v473 = vpop.f32.mrf.mxu0
    %v474 = vadd.f32 %v401, %v473
    %v475 = vand.u32 %v50, 4294901760
    %v476 = vsub.f32 %v50, %v475
    %v477 = vand.u32 %v476, 4294901760
    %v478 = vsub.f32 %v476, %v477
    %v479 = vand.u32 %v478, 4294901760
    %480 = vmatmul.f32.gmra.mxu0 %v479
    %v481 = vpop.f32.mrf.mxu0
    %v482 = vadd.f32 %v405, %v481
    %v483 = vand.u32 %v52, 4294901760
    %v484 = vsub.f32 %v52, %v483
    %v485 = vand.u32 %v484, 4294901760
    %v486 = vsub.f32 %v484, %v485
    %v487 = vand.u32 %v486, 4294901760
    %488 = vmatmul.f32.gmra.mxu0 %v487
    %v489 = vpop.f32.mrf.mxu0
    %v490 = vadd.f32 %v409, %v489
    %491 = vdwg.mxu0
    %492 = vmatpush.msra.mxu0 0.0
    %493 = vmatpush.msra.mxu0 0.0
    %494 = vmatpush.msra.mxu0 0.0
    %495 = vmatpush.msra.mxu0 0.0
    %496 = vmatpush.msra.mxu0 0.0
    %497 = vmatpush.msra.mxu0 0.0
    %498 = vmatpush.msra.mxu0 0.0
    %499 = vmatpush.msra.mxu0 0.0
    %500 = vmatpush.msra.mxu0 0.0
    %501 = vmatpush.msra.mxu0 0.0
    %502 = vmatpush.msra.mxu0 0.0
    %503 = vmatpush.msra.mxu0 0.0
    %504 = vmatpush.msra.mxu0 0.0
    %505 = vmatpush.msra.mxu0 0.0
    %506 = vmatpush.msra.mxu0 0.0
    %507 = vmatpush.msra.mxu0 0.0
    %v508 = vand.u32 %v38, 4294901760
    %509 = vmatmul.f32.gmra.mxu0 %v508
    %v510 = vpop.f32.mrf.mxu0
    %v511 = vadd.f32 %v434, %v510
    %v512 = vand.u32 %v40, 4294901760
    %513 = vmatmul.f32.gmra.mxu0 %v512
    %v514 = vpop.f32.mrf.mxu0
    %v515 = vadd.f32 %v442, %v514
    %v516 = vand.u32 %v42, 4294901760
    %517 = vmatmul.f32.gmra.mxu0 %v516
    %v518 = vpop.f32.mrf.mxu0
    %v519 = vadd.f32 %v450, %v518
    %v520 = vand.u32 %v44, 4294901760
    %521 = vmatmul.f32.gmra.mxu0 %v520
    %v522 = vpop.f32.mrf.mxu0
    %v523 = vadd.f32 %v458, %v522
    %v524 = vand.u32 %v46, 4294901760
    %525 = vmatmul.f32.gmra.mxu0 %v524
    %v526 = vpop.f32.mrf.mxu0
    %v527 = vadd.f32 %v466, %v526
    %v528 = vand.u32 %v48, 4294901760
    %529 = vmatmul.f32.gmra.mxu0 %v528
    %v530 = vpop.f32.mrf.mxu0
    %v531 = vadd.f32 %v474, %v530
    %v532 = vand.u32 %v50, 4294901760
    %533 = vmatmul.f32.gmra.mxu0 %v532
    %v534 = vpop.f32.mrf.mxu0
    %v535 = vadd.f32 %v482, %v534
    %v536 = vand.u32 %v52, 4294901760
    %537 = vmatmul.f32.gmra.mxu0 %v536
    %v538 = vpop.f32.mrf.mxu0
    %v539 = vadd.f32 %v490, %v538
    %540 = vdwg.mxu0
    %541 = vmatpush.msra.mxu0 0.0
    %542 = vmatpush.msra.mxu0 0.0
    %543 = vmatpush.msra.mxu0 0.0
    %544 = vmatpush.msra.mxu0 0.0
    %545 = vmatpush.msra.mxu0 0.0
    %546 = vmatpush.msra.mxu0 0.0
    %547 = vmatpush.msra.mxu0 0.0
    %548 = vmatpush.msra.mxu0 0.0
    %549 = vmatpush.msra.mxu0 0.0
    %550 = vmatpush.msra.mxu0 0.0
    %551 = vmatpush.msra.mxu0 0.0
    %552 = vmatpush.msra.mxu0 0.0
    %553 = vmatpush.msra.mxu0 0.0
    %554 = vmatpush.msra.mxu0 0.0
    %555 = vmatpush.msra.mxu0 0.0
    %556 = vmatpush.msra.mxu0 0.0
    %v557 = vand.u32 %v38, 4294901760
    %v558 = vsub.f32 %v38, %v557
    %559 = vmatmul.f32.gmra.mxu0 %v558
    %v560 = vpop.f32.mrf.mxu0
    %v561 = vadd.f32 %v511, %v560
    %v562 = vand.u32 %v40, 4294901760
    %v563 = vsub.f32 %v40, %v562
    %564 = vmatmul.f32.gmra.mxu0 %v563
    %v565 = vpop.f32.mrf.mxu0
    %v566 = vadd.f32 %v515, %v565
    %v567 = vand.u32 %v42, 4294901760
    %v568 = vsub.f32 %v42, %v567
    %569 = vmatmul.f32.gmra.mxu0 %v568
    %v570 = vpop.f32.mrf.mxu0
    %v571 = vadd.f32 %v519, %v570
    %v572 = vand.u32 %v44, 4294901760
    %v573 = vsub.f32 %v44, %v572
    %574 = vmatmul.f32.gmra.mxu0 %v573
    %v575 = vpop.f32.mrf.mxu0
    %v576 = vadd.f32 %v523, %v575
    %v577 = vand.u32 %v46, 4294901760
    %v578 = vsub.f32 %v46, %v577
    %579 = vmatmul.f32.gmra.mxu0 %v578
    %v580 = vpop.f32.mrf.mxu0
    %v581 = vadd.f32 %v527, %v580
    %v582 = vand.u32 %v48, 4294901760
    %v583 = vsub.f32 %v48, %v582
    %584 = vmatmul.f32.gmra.mxu0 %v583
    %v585 = vpop.f32.mrf.mxu0
    %v586 = vadd.f32 %v531, %v585
    %v587 = vand.u32 %v50, 4294901760
    %v588 = vsub.f32 %v50, %v587
    %589 = vmatmul.f32.gmra.mxu0 %v588
    %v590 = vpop.f32.mrf.mxu0
    %v591 = vadd.f32 %v535, %v590
    %v592 = vand.u32 %v52, 4294901760
    %v593 = vsub.f32 %v52, %v592
    %594 = vmatmul.f32.gmra.mxu0 %v593
    %v595 = vpop.f32.mrf.mxu0
    %v596 = vadd.f32 %v539, %v595
    %597 = vdwg.mxu0
    %598 = vmatpush.msra.mxu0 1.0
    %599 = vmatpush.msra.mxu0 1.0
    %600 = vmatpush.msra.mxu0 1.0
    %601 = vmatpush.msra.mxu0 1.0
    %602 = vmatpush.msra.mxu0 1.0
    %603 = vmatpush.msra.mxu0 1.0
    %604 = vmatpush.msra.mxu0 1.0
    %605 = vmatpush.msra.mxu0 1.0
    %606 = vmatpush.msra.mxu0 1.0
    %607 = vmatpush.msra.mxu0 1.0
    %608 = vmatpush.msra.mxu0 1.0
    %609 = vmatpush.msra.mxu0 1.0
    %610 = vmatpush.msra.mxu0 1.0
    %611 = vmatpush.msra.mxu0 1.0
    %612 = vmatpush.msra.mxu0 1.0
    %613 = vmatpush.msra.mxu0 1.0
    %v614 = vand.u32 %v38, 4294901760
    %v615 = vsub.f32 %v38, %v614
    %v616 = vand.u32 %v615, 4294901760
    %617 = vmatmul.f32.gmra.mxu0 %v616
    %v618 = vpop.f32.mrf.mxu0
    %v619 = vadd.f32 %v561, %v618
    %v620 = vand.u32 %v40, 4294901760
    %v621 = vsub.f32 %v40, %v620
    %v622 = vand.u32 %v621, 4294901760
    %623 = vmatmul.f32.gmra.mxu0 %v622
    %v624 = vpop.f32.mrf.mxu0
    %v625 = vadd.f32 %v566, %v624
    %v626 = vand.u32 %v42, 4294901760
    %v627 = vsub.f32 %v42, %v626
    %v628 = vand.u32 %v627, 4294901760
    %629 = vmatmul.f32.gmra.mxu0 %v628
    %v630 = vpop.f32.mrf.mxu0
    %v631 = vadd.f32 %v571, %v630
    %v632 = vand.u32 %v44, 4294901760
    %v633 = vsub.f32 %v44, %v632
    %v634 = vand.u32 %v633, 4294901760
    %635 = vmatmul.f32.gmra.mxu0 %v634
    %v636 = vpop.f32.mrf.mxu0
    %v637 = vadd.f32 %v576, %v636
    %v638 = vand.u32 %v46, 4294901760
    %v639 = vsub.f32 %v46, %v638
    %v640 = vand.u32 %v639, 4294901760
    %641 = vmatmul.f32.gmra.mxu0 %v640
    %v642 = vpop.f32.mrf.mxu0
    %v643 = vadd.f32 %v581, %v642
    %v644 = vand.u32 %v48, 4294901760
    %v645 = vsub.f32 %v48, %v644
    %v646 = vand.u32 %v645, 4294901760
    %647 = vmatmul.f32.gmra.mxu0 %v646
    %v648 = vpop.f32.mrf.mxu0
    %v649 = vadd.f32 %v586, %v648
    %v650 = vand.u32 %v50, 4294901760
    %v651 = vsub.f32 %v50, %v650
    %v652 = vand.u32 %v651, 4294901760
    %653 = vmatmul.f32.gmra.mxu0 %v652
    %v654 = vpop.f32.mrf.mxu0
    %v655 = vadd.f32 %v591, %v654
    %v656 = vand.u32 %v52, 4294901760
    %v657 = vsub.f32 %v52, %v656
    %v658 = vand.u32 %v657, 4294901760
    %659 = vmatmul.f32.gmra.mxu0 %v658
    %v660 = vpop.f32.mrf.mxu0
    %v661 = vadd.f32 %v596, %v660
    %662 = vdwg.mxu0
    %663 = vmatpush.msra.mxu0 0.0
    %664 = vmatpush.msra.mxu0 0.0
    %665 = vmatpush.msra.mxu0 0.0
    %666 = vmatpush.msra.mxu0 0.0
    %667 = vmatpush.msra.mxu0 0.0
    %668 = vmatpush.msra.mxu0 0.0
    %669 = vmatpush.msra.mxu0 0.0
    %670 = vmatpush.msra.mxu0 0.0
    %671 = vmatpush.msra.mxu0 0.0
    %672 = vmatpush.msra.mxu0 0.0
    %673 = vmatpush.msra.mxu0 0.0
    %674 = vmatpush.msra.mxu0 0.0
    %675 = vmatpush.msra.mxu0 0.0
    %676 = vmatpush.msra.mxu0 0.0
    %677 = vmatpush.msra.mxu0 0.0
    %678 = vmatpush.msra.mxu0 0.0
    %v679 = vand.u32 %v38, 4294901760
    %680 = vmatmul.f32.gmra.mxu0 %v679
    %v681 = vpop.f32.mrf.mxu0
    %v682 = vadd.f32 %v619, %v681
    %v683 = vand.u32 %v40, 4294901760
    %684 = vmatmul.f32.gmra.mxu0 %v683
    %v685 = vpop.f32.mrf.mxu0
    %v686 = vadd.f32 %v625, %v685
    %v687 = vand.u32 %v42, 4294901760
    %688 = vmatmul.f32.gmra.mxu0 %v687
    %v689 = vpop.f32.mrf.mxu0
    %v690 = vadd.f32 %v631, %v689
    %v691 = vand.u32 %v44, 4294901760
    %692 = vmatmul.f32.gmra.mxu0 %v691
    %v693 = vpop.f32.mrf.mxu0
    %v694 = vadd.f32 %v637, %v693
    %v695 = vand.u32 %v46, 4294901760
    %696 = vmatmul.f32.gmra.mxu0 %v695
    %v697 = vpop.f32.mrf.mxu0
    %v698 = vadd.f32 %v643, %v697
    %v699 = vand.u32 %v48, 4294901760
    %700 = vmatmul.f32.gmra.mxu0 %v699
    %v701 = vpop.f32.mrf.mxu0
    %v702 = vadd.f32 %v649, %v701
    %v703 = vand.u32 %v50, 4294901760
    %704 = vmatmul.f32.gmra.mxu0 %v703
    %v705 = vpop.f32.mrf.mxu0
    %v706 = vadd.f32 %v655, %v705
    %v707 = vand.u32 %v52, 4294901760
    %708 = vmatmul.f32.gmra.mxu0 %v707
    %v709 = vpop.f32.mrf.mxu0
    %v710 = vadd.f32 %v661, %v709
    %711 = vdwg.mxu0
    %712 = vmatpush.msra.mxu0 1.0
    %713 = vmatpush.msra.mxu0 1.0
    %714 = vmatpush.msra.mxu0 1.0
    %715 = vmatpush.msra.mxu0 1.0
    %716 = vmatpush.msra.mxu0 1.0
    %717 = vmatpush.msra.mxu0 1.0
    %718 = vmatpush.msra.mxu0 1.0
    %719 = vmatpush.msra.mxu0 1.0
    %720 = vmatpush.msra.mxu0 1.0
    %721 = vmatpush.msra.mxu0 1.0
    %722 = vmatpush.msra.mxu0 1.0
    %723 = vmatpush.msra.mxu0 1.0
    %724 = vmatpush.msra.mxu0 1.0
    %725 = vmatpush.msra.mxu0 1.0
    %726 = vmatpush.msra.mxu0 1.0
    %727 = vmatpush.msra.mxu0 1.0
    %v728 = vand.u32 %v38, 4294901760
    %729 = vmatmul.f32.gmra.mxu0 %v728
    %v730 = vpop.f32.mrf.mxu0
    %v731 = vadd.f32 %v682, %v730
    %v732 = vand.u32 %v40, 4294901760
    %733 = vmatmul.f32.gmra.mxu0 %v732
    %v734 = vpop.f32.mrf.mxu0
    %v735 = vadd.f32 %v686, %v734
    %v736 = vand.u32 %v42, 4294901760
    %737 = vmatmul.f32.gmra.mxu0 %v736
    %v738 = vpop.f32.mrf.mxu0
    %v739 = vadd.f32 %v690, %v738
    %v740 = vand.u32 %v44, 4294901760
    %741 = vmatmul.f32.gmra.mxu0 %v740
    %v742 = vpop.f32.mrf.mxu0
    %v743 = vadd.f32 %v694, %v742
    %v744 = vand.u32 %v46, 4294901760
    %745 = vmatmul.f32.gmra.mxu0 %v744
    %v746 = vpop.f32.mrf.mxu0
    %v747 = vadd.f32 %v698, %v746
    %v748 = vand.u32 %v48, 4294901760
    %749 = vmatmul.f32.gmra.mxu0 %v748
    %v750 = vpop.f32.mrf.mxu0
    %v751 = vadd.f32 %v702, %v750
    %v752 = vand.u32 %v50, 4294901760
    %753 = vmatmul.f32.gmra.mxu0 %v752
    %v754 = vpop.f32.mrf.mxu0
    %v755 = vadd.f32 %v706, %v754
    %v756 = vand.u32 %v52, 4294901760
    %757 = vmatmul.f32.gmra.mxu0 %v756
    %v758 = vpop.f32.mrf.mxu0
    %v759 = vadd.f32 %v710, %v758
    %760 = vdwg.mxu0
    %v761 = vadd.f32 %v53, %v731
    %v762 = vadd.f32 %v54, %v735
    %v763 = vadd.f32 %v55, %v739
    %v764 = vadd.f32 %v56, %v743
    %v765 = vadd.f32 %v57, %v747
    %v766 = vadd.f32 %v58, %v751
    %v767 = vadd.f32 %v59, %v755
    %v768 = vadd.f32 %v60, %v759
    %vm769 = vcmask 7168
    %770 = vst.msk [vmem:[%s1] sm:$0xff] %vm769, %v761
    %771 = vst.msk [vmem:[%s1 + $0x8] sm:$0xff] %vm769, %v762
    %772 = vst.msk [vmem:[%s1 + $0x10] sm:$0xff] %vm769, %v763
    %773 = vst.msk [vmem:[%s1 + $0x18] sm:$0xff] %vm769, %v764
    %774 = vst.msk [vmem:[%s1 + $0x20] sm:$0xff] %vm769, %v765
    %775 = vst.msk [vmem:[%s1 + $0x28] sm:$0xff] %vm769, %v766
    %776 = vst.msk [vmem:[%s1 + $0x30] sm:$0xff] %vm769, %v767
    %777 = vst.msk [vmem:[%s1 + $0x38] sm:$0xff] %vm769, %v768
    // Predicated region
    $region14: #{tpu_custom_call.1} parent=1 // pred_check
      _
    $region15: #{tpu_custom_call.1} parent=1 // pred_check_branch
      %779 = sbr.rel (0) target = $region17
    $region16: #{tpu_custom_call.1} parent=1 // pred_region
      _
    $region17: #{tpu_custom_call.1} parent=1 // pred_fallthru
      _
    // Predicated region
    $region18: #{tpu_custom_call.1} parent=1 // pred_check
      _
    $region19: #{tpu_custom_call.1} parent=1 // pred_check_branch
      %781 = sbr.rel (0) target = $region21
    $region20: #{tpu_custom_call.1} parent=1 // pred_region
      _
    $region21: #{tpu_custom_call.1} parent=1 // pred_fallthru
      _
    %782 = vsyncpa [#allocation3], 1

</llo_original>
